<compile_context>
chip_gen: v7x
topology: tpu7x:2x2x1
jax: 0.10.0
libtpu: 0.0.40
codegen_flags: <defaults>
</compile_context>

<pallas_src>
import jax
import jax.numpy as jnp
from jax.experimental import pallas as pl
from jax.experimental.pallas import tpu as pltpu


def _make_resblock_kernel(M, H, WC, res_scale):
    """Fused residual-block kernel over an (M, WC) row slab (M = images * H)."""

    def kernel(x_ref, w1_ref, b1_ref, w2_ref, b2_ref, out_ref):
        # x_ref      : (M, WC)      stacked image rows, channels merged on lanes
        # w{1,2}_ref : (3*WC, WC)   bf16 stacked banded weights [dy=0; dy=1; dy=2]
        # b{1,2}_ref : (1, WC)      f32 per-channel bias tiled across W
        # out_ref    : (M, WC)
        x = x_ref[...].astype(jnp.float32)          # no-op when the input is f32

        # Per-image vertical boundary masks, hoisted (used by both convs).
        # Row r belongs to image r // H at in-image row r % H.
        rmod = jax.lax.broadcasted_iota(jnp.int32, (M, WC), 0) % H
        not_first = rmod > 0
        not_last = rmod < (H - 1)

        def conv3x3(inp, w_ref, b_ref):
            # Vertical taps via XLU roll + per-image zero masks; horizontal taps
            # and the channel contraction are folded into the banded weights.
            # The three dy taps are merged along lanes => ONE bf16 MXU matmul
            # with K = 3*WC per conv, f32 accumulation.
            up = jnp.where(not_first, pltpu.roll(inp, shift=1, axis=0), 0.0)
            dn = jnp.where(not_last, pltpu.roll(inp, shift=M - 1, axis=0), 0.0)
            lhs = jnp.concatenate(
                [up.astype(jnp.bfloat16),
                 inp.astype(jnp.bfloat16),
                 dn.astype(jnp.bfloat16)], axis=-1)                 # (M, 3*WC)
            acc = jnp.dot(lhs, w_ref[...], preferred_element_type=jnp.float32)
            return acc + b_ref[...]

        h = jnp.maximum(conv3x3(x, w1_ref, b1_ref), 0.0)    # conv1 + bias + ReLU
        y = conv3x3(h, w2_ref, b2_ref)                      # conv2 + bias
        out_ref[...] = (x + y * jnp.float32(res_scale)).astype(out_ref.dtype)

    return kernel


def _banded_weights_stacked(w_oihw, W, dtype):
    """OIHW 3x3 conv weights -> (3*W*Cin, W*Cout) stacked block-banded matrix.

    Row index = dy*(W*Cin) + xin*Cin + ci, column = xout*Cout + co, holding
    w_hwio[dy, dx, ci, co] with dx = xin - xout + 1 when 0 <= dx <= 2, else 0
    (the zeros implement the conv's horizontal zero-padding exactly).  The dy
    blocks are stacked in the same order as the lane-concat [up, x, dn].
    """
    w_hwio = jnp.transpose(w_oihw, (2, 3, 1, 0))           # (3, 3, Cin, Cout)
    _, _, Cin, Cout = w_hwio.shape
    xin = jnp.arange(W)[:, None]
    xout = jnp.arange(W)[None, :]
    dx = xin - xout + 1                                    # (W, W)
    valid = (dx >= 0) & (dx <= 2)
    dx_c = jnp.clip(dx, 0, 2)
    m = w_hwio[:, dx_c]                                    # (3, W, W, Cin, Cout)
    m = jnp.where(valid[None, :, :, None, None], m, 0.0)
    m = jnp.transpose(m, (0, 1, 3, 2, 4))                  # (3, xin, Cin, xout, Cout)
    return m.reshape(3 * W * Cin, W * Cout).astype(dtype)


def make_resblock_params(w1_oihw, b1, w2_oihw, b2, W, mxu_dtype=jnp.bfloat16):
    """Precompute (and cache, once per layer) the banded bf16 weights + biases."""
    w1s = _banded_weights_stacked(w1_oihw, W, mxu_dtype)   # (3*W*C, W*C)
    w2s = _banded_weights_stacked(w2_oihw, W, mxu_dtype)
    b1t = jnp.tile(b1.astype(jnp.float32), W).reshape(1, -1)   # (1, W*C)
    b2t = jnp.tile(b2.astype(jnp.float32), W).reshape(1, -1)
    return (w1s, b1t, w2s, b2t)


def residual_block_nobn_rows(x_rows, params, *, n_images, rows_per_image,
                             res_scale=1.0):
    """Core forward on the lane-dense (N*H, W*C) row layout."""
    w1s, b1t, w2s, b2t = params
    N, H = int(n_images), int(rows_per_image)
    total_rows, WC = x_rows.shape
    assert total_rows == N * H, "x_rows must be (N*H, W*C)"

    # Images per grid step: fill the MXU M dimension (>= ~256 rows) while
    # keeping each activation block <= ~4 MiB (cheap double-buffering).
    itemsize = x_rows.dtype.itemsize
    nb = int(min(N,
                 max(1, pl.cdiv(256, H)),
                 max(1, (4 << 20) // (H * WC * itemsize))))
    if (nb * H) % 8 != 0:
        # Keep row-blocks sublane-aligned; fall back to one block per call.
        # TODO(synk): tile H with a 1-row halo instead for huge images.
        nb = N
    n_pad = int(pl.cdiv(N, nb)) * nb
    if n_pad != N:
        pad = jnp.zeros(((n_pad - N) * H, WC), x_rows.dtype)
        x_rows = jnp.concatenate([x_rows, pad], axis=0)
    num_blocks = n_pad // nb
    M = nb * H

    # VMEM budget from the actual footprint; cap ~48 MiB for v7x (64 MiB phys).
    w_bytes = (w1s.size * w1s.dtype.itemsize + w2s.size * w2s.dtype.itemsize)
    blk_bytes = M * WC * itemsize
    vmem_limit = int(min(max(8 * blk_bytes + 3 * w_bytes + (8 << 20), 16 << 20),
                         48 << 20))

    kernel = _make_resblock_kernel(M, H, WC, float(res_scale))

    out_rows = pl.pallas_call(
        kernel,
        out_shape=jax.ShapeDtypeStruct((n_pad * H, WC), x_rows.dtype),
        grid_spec=pltpu.PrefetchScalarGridSpec(
            num_scalar_prefetch=0,
            grid=(num_blocks,),
            in_specs=[
                pl.BlockSpec((M, WC), lambda g: (g, 0)),         # activations
                pl.BlockSpec((3 * WC, WC), lambda g: (0, 0)),    # w1 (resident)
                pl.BlockSpec((1, WC), lambda g: (0, 0)),         # b1
                pl.BlockSpec((3 * WC, WC), lambda g: (0, 0)),    # w2 (resident)
                pl.BlockSpec((1, WC), lambda g: (0, 0)),         # b2
            ],
            out_specs=pl.BlockSpec((M, WC), lambda g: (g, 0)),
        ),
        compiler_params=pltpu.CompilerParams(
            dimension_semantics=("parallel",),   # row-blocks are independent
            vmem_limit_bytes=vmem_limit,
        ),
    )(x_rows, w1s, b1t, w2s, b2t)

    return out_rows[: N * H] if n_pad != N else out_rows


def residual_block_nobn(x_nchw, w1_oihw, b1, w2_oihw, b2, res_scale=1.0,
                        params=None):
    """NCHW drop-in wrapper matching the PyTorch module's forward().

    In a full network, keep activations in the (N*H, W*C) row layout across
    blocks and build `params` once per layer (see __main__); the transposes
    here exist only for NCHW parity with the reference module.
    """
    N, C, H, W = x_nchw.shape
    if params is None:
        params = make_resblock_params(w1_oihw, b1, w2_oihw, b2, W)
    x_rows = jnp.transpose(x_nchw, (0, 2, 3, 1)).reshape(N * H, W * C)
    out_rows = residual_block_nobn_rows(
        x_rows, params, n_images=N, rows_per_image=H, res_scale=res_scale)
    return jnp.transpose(out_rows.reshape(N, H, W, C), (0, 3, 1, 2))


def _reference_forward(x_nchw, w1, b1, w2, b2, res_scale):
    """Pure-JAX f32 reference matching PyTorch semantics (NCHW / OIHW)."""
    dn = ("NCHW", "OIHW", "NCHW")
    h = jax.lax.conv_general_dilated(
        x_nchw, w1, (1, 1), ((1, 1), (1, 1)), dimension_numbers=dn
    ) + b1[None, :, None, None]
    h = jnp.maximum(h, 0.0)
    h = jax.lax.conv_general_dilated(
        h, w2, (1, 1), ((1, 1), (1, 1)), dimension_numbers=dn
    ) + b2[None, :, None, None]
    return x_nchw + h * res_scale


if __name__ == "__main__":
    # Small config: W*C = 128 -> lane-dense rows; N*H = 32 rows in one block.
    N, C, H, W = 2, 8, 16, 16
    res_scale = 1.0

    key = jax.random.PRNGKey(0)
    kx, k1, k2, kb1, kb2 = jax.random.split(key, 5)

    x = jax.random.normal(kx, (N, C, H, W), dtype=jnp.float32)

    # kaiming_normal_ (fan_in = C*3*3, gain=sqrt(2)) scaled by 0.1, plus small
    # biases to exercise the bias path (module semantics hold for any init).
    std = (2.0 / (C * 3 * 3)) ** 0.5
    w1 = jax.random.normal(k1, (C, C, 3, 3), dtype=jnp.float32) * std * 0.1
    w2 = jax.random.normal(k2, (C, C, 3, 3), dtype=jnp.float32) * std * 0.1
    b1 = jax.random.normal(kb1, (C,), dtype=jnp.float32) * 0.02
    b2 = jax.random.normal(kb2, (C,), dtype=jnp.float32) * 0.02

    # Banded bf16 weights / tiled biases built ONCE per layer and reused.
    params = make_resblock_params(w1, b1, w2, b2, W)

    out = residual_block_nobn(x, w1, b1, w2, b2, res_scale=res_scale,
                              params=params)
    out = jax.block_until_ready(out)

    ref = _reference_forward(x, w1, b1, w2, b2, res_scale)
    assert out.shape == (N, C, H, W)
    err = float(jnp.max(jnp.abs(out - ref)))
    # bf16 MXU operands (f32 accumulate): tolerance relaxed vs the f32 path.
    assert err < 1e-2, f"mismatch vs reference: max abs err {err}"

    print("KERNEL_OK")
</pallas_src>

<mosaic_0001>
module attributes {stable_mosaic.version = 11 : i64} {
  func.func @kernel(%arg0: i32, %arg1: memref<32x128xf32, #tpu.memory_space<vmem>>, %arg2: memref<384x128xbf16, #tpu.memory_space<vmem>>, %arg3: memref<1x128xf32, #tpu.memory_space<vmem>>, %arg4: memref<384x128xbf16, #tpu.memory_space<vmem>>, %arg5: memref<1x128xf32, #tpu.memory_space<vmem>>, %arg6: memref<32x128xf32, #tpu.memory_space<vmem>>) attributes {dimension_semantics = [#tpu.dimension_semantics<parallel>], iteration_bounds = array<i64: 1>, scalar_prefetch = 0 : i64, scratch_operands = 0 : i64, tpu.core_type = #tpu.core_type<tc>, window_params = [{transform_indices = @transform_0, window_bounds = array<i64: 32, 128>}, {pipeline_mode = #tpu.pipeline_mode<synchronous>, transform_indices = @transform_1, window_bounds = array<i64: 384, 128>}, {pipeline_mode = #tpu.pipeline_mode<synchronous>, transform_indices = @transform_2, window_bounds = array<i64: 1, 128>}, {pipeline_mode = #tpu.pipeline_mode<synchronous>, transform_indices = @transform_3, window_bounds = array<i64: 384, 128>}, {pipeline_mode = #tpu.pipeline_mode<synchronous>, transform_indices = @transform_4, window_bounds = array<i64: 1, 128>}, {transform_indices = @transform_5, window_bounds = array<i64: 32, 128>}]} {
    %c0 = arith.constant 0 : index
    %c0_0 = arith.constant 0 : index
    %0 = vector.load %arg1[%c0, %c0_0] : memref<32x128xf32, #tpu.memory_space<vmem>>, vector<32x128xf32>
    %1 = tpu.iota {dimensions = array<i32: 0>} : vector<32x128xi32>
    %c16_i32 = arith.constant 16 : i32
    %c0_i32 = arith.constant 0 : i32
    %2 = arith.cmpi eq, %c16_i32, %c0_i32 : i32
    %c1_i32 = arith.constant 1 : i32
    %3 = arith.select %2, %c1_i32, %c16_i32 : i32
    %4 = vector.broadcast %3 : i32 to vector<32x128xi32>
    %5 = arith.remsi %1, %4 : vector<32x128xi32>
    %c0_i32_1 = arith.constant 0 : i32
    %6 = vector.broadcast %c0_i32_1 : i32 to vector<32x128xi32>
    %7 = arith.cmpi ne, %5, %6 : vector<32x128xi32>
    %c0_i32_2 = arith.constant 0 : i32
    %8 = vector.broadcast %c0_i32_2 : i32 to vector<32x128xi32>
    %9 = arith.cmpi slt, %5, %8 : vector<32x128xi32>
    %c0_i32_3 = arith.constant 0 : i32
    %10 = arith.cmpi slt, %3, %c0_i32_3 : i32
    %11 = vector.broadcast %10 : i1 to vector<32x128xi1>
    %12 = vector.broadcast %11 : vector<32x128xi1> to vector<32x128xi1>
    %13 = arith.xori %9, %12 : vector<32x128xi1>
    %14 = arith.andi %13, %7 : vector<32x128xi1>
    %15 = vector.broadcast %3 : i32 to vector<32x128xi32>
    %16 = arith.addi %5, %15 : vector<32x128xi32>
    %17 = arith.select %14, %16, %5 : vector<32x128xi1>, vector<32x128xi32>
    %c0_i32_4 = arith.constant 0 : i32
    %18 = vector.broadcast %c0_i32_4 : i32 to vector<32x128xi32>
    %19 = arith.cmpi sgt, %17, %18 : vector<32x128xi32>
    %c15_i32 = arith.constant 15 : i32
    %20 = vector.broadcast %c15_i32 : i32 to vector<32x128xi32>
    %21 = arith.cmpi slt, %17, %20 : vector<32x128xi32>
    %c1_i32_5 = arith.constant 1 : i32
    %22 = tpu.dynamic_rotate %0 by %c1_i32_5 dim 0 : vector<32x128xf32>, i32 -> vector<32x128xf32>
    %cst = arith.constant 0.000000e+00 : f32
    %23 = vector.broadcast %cst : f32 to vector<32x128xf32>
    %24 = arith.select %19, %22, %23 : vector<32x128xi1>, vector<32x128xf32>
    %c31_i32 = arith.constant 31 : i32
    %25 = tpu.dynamic_rotate %0 by %c31_i32 dim 0 : vector<32x128xf32>, i32 -> vector<32x128xf32>
    %cst_6 = arith.constant 0.000000e+00 : f32
    %26 = vector.broadcast %cst_6 : f32 to vector<32x128xf32>
    %27 = arith.select %21, %25, %26 : vector<32x128xi1>, vector<32x128xf32>
    %28 = arith.truncf %24 : vector<32x128xf32> to vector<32x128xbf16>
    %29 = arith.truncf %0 : vector<32x128xf32> to vector<32x128xbf16>
    %30 = arith.truncf %27 : vector<32x128xf32> to vector<32x128xbf16>
    %31 = tpu.concatenate %28, %29, %30 in 1 : vector<32x128xbf16>, vector<32x128xbf16>, vector<32x128xbf16> -> vector<32x384xbf16>
    %c0_7 = arith.constant 0 : index
    %c0_8 = arith.constant 0 : index
    %32 = vector.load %arg2[%c0_7, %c0_8] : memref<384x128xbf16, #tpu.memory_space<vmem>>, vector<384x128xbf16>
    %cst_9 = arith.constant dense<0.000000e+00> : vector<32x128xf32>
    %33 = tpu.matmul %31, %32, %cst_9 {dimension_numbers = #tpu.dot_dimension_numbers<[1], [0], [0], [1], [0, 0, 1, 1], [], []>} : vector<32x384xbf16>, vector<384x128xbf16>, vector<32x128xf32> -> vector<32x128xf32>
    %c0_10 = arith.constant 0 : index
    %c0_11 = arith.constant 0 : index
    %34 = vector.load %arg3[%c0_10, %c0_11] : memref<1x128xf32, #tpu.memory_space<vmem>>, vector<1x128xf32>
    %35 = vector.broadcast %34 : vector<1x128xf32> to vector<32x128xf32>
    %36 = arith.addf %33, %35 : vector<32x128xf32>
    %cst_12 = arith.constant 0.000000e+00 : f32
    %37 = vector.broadcast %cst_12 : f32 to vector<32x128xf32>
    %38 = arith.maximumf %36, %37 : vector<32x128xf32>
    %c1_i32_13 = arith.constant 1 : i32
    %39 = tpu.dynamic_rotate %38 by %c1_i32_13 dim 0 : vector<32x128xf32>, i32 -> vector<32x128xf32>
    %cst_14 = arith.constant 0.000000e+00 : f32
    %40 = vector.broadcast %cst_14 : f32 to vector<32x128xf32>
    %41 = arith.select %19, %39, %40 : vector<32x128xi1>, vector<32x128xf32>
    %c31_i32_15 = arith.constant 31 : i32
    %42 = tpu.dynamic_rotate %38 by %c31_i32_15 dim 0 : vector<32x128xf32>, i32 -> vector<32x128xf32>
    %cst_16 = arith.constant 0.000000e+00 : f32
    %43 = vector.broadcast %cst_16 : f32 to vector<32x128xf32>
    %44 = arith.select %21, %42, %43 : vector<32x128xi1>, vector<32x128xf32>
    %45 = arith.truncf %41 : vector<32x128xf32> to vector<32x128xbf16>
    %46 = arith.truncf %38 : vector<32x128xf32> to vector<32x128xbf16>
    %47 = arith.truncf %44 : vector<32x128xf32> to vector<32x128xbf16>
    %48 = tpu.concatenate %45, %46, %47 in 1 : vector<32x128xbf16>, vector<32x128xbf16>, vector<32x128xbf16> -> vector<32x384xbf16>
    %c0_17 = arith.constant 0 : index
    %c0_18 = arith.constant 0 : index
    %49 = vector.load %arg4[%c0_17, %c0_18] : memref<384x128xbf16, #tpu.memory_space<vmem>>, vector<384x128xbf16>
    %cst_19 = arith.constant dense<0.000000e+00> : vector<32x128xf32>
    %50 = tpu.matmul %48, %49, %cst_19 {dimension_numbers = #tpu.dot_dimension_numbers<[1], [0], [0], [1], [0, 0, 1, 1], [], []>} : vector<32x384xbf16>, vector<384x128xbf16>, vector<32x128xf32> -> vector<32x128xf32>
    %c0_20 = arith.constant 0 : index
    %c0_21 = arith.constant 0 : index
    %51 = vector.load %arg5[%c0_20, %c0_21] : memref<1x128xf32, #tpu.memory_space<vmem>>, vector<1x128xf32>
    %52 = vector.broadcast %51 : vector<1x128xf32> to vector<32x128xf32>
    %53 = arith.addf %50, %52 : vector<32x128xf32>
    %cst_22 = arith.constant 1.000000e+00 : f32
    %54 = vector.broadcast %cst_22 : f32 to vector<32x128xf32>
    %55 = arith.mulf %53, %54 : vector<32x128xf32>
    %56 = arith.addf %0, %55 : vector<32x128xf32>
    %c0_23 = arith.constant 0 : index
    %c0_24 = arith.constant 0 : index
    %57 = vector.load %arg6[%c0_23, %c0_24] : memref<32x128xf32, #tpu.memory_space<vmem>>, vector<32x128xf32>
    tpu.vector_store %arg6[%c0_23, %c0_24], %56 {strides = array<i32>} : memref<32x128xf32, #tpu.memory_space<vmem>>, vector<32x128xf32>,
    return
  }
  func.func @transform_0(%arg0: i32) -> (i32, i32) {
    %c0_i32 = arith.constant 0 : i32
    %c0_i32_0 = arith.constant 0 : i32
    return %arg0, %c0_i32 : i32, i32
  }
  func.func @transform_1(%arg0: i32) -> (i32, i32) {
    %c0_i32 = arith.constant 0 : i32
    %c0_i32_0 = arith.constant 0 : i32
    %c0_i32_1 = arith.constant 0 : i32
    return %c0_i32, %c0_i32_0 : i32, i32
  }
  func.func @transform_2(%arg0: i32) -> (i32, i32) {
    %c0_i32 = arith.constant 0 : i32
    %c0_i32_0 = arith.constant 0 : i32
    %c0_i32_1 = arith.constant 0 : i32
    return %c0_i32, %c0_i32_0 : i32, i32
  }
  func.func @transform_3(%arg0: i32) -> (i32, i32) {
    %c0_i32 = arith.constant 0 : i32
    %c0_i32_0 = arith.constant 0 : i32
    %c0_i32_1 = arith.constant 0 : i32
    return %c0_i32, %c0_i32_0 : i32, i32
  }
  func.func @transform_4(%arg0: i32) -> (i32, i32) {
    %c0_i32 = arith.constant 0 : i32
    %c0_i32_0 = arith.constant 0 : i32
    %c0_i32_1 = arith.constant 0 : i32
    return %c0_i32, %c0_i32_0 : i32, i32
  }
  func.func @transform_5(%arg0: i32) -> (i32, i32) {
    %c0_i32 = arith.constant 0 : i32
    %c0_i32_0 = arith.constant 0 : i32
    return %arg0, %c0_i32 : i32, i32
  }
}

</mosaic_0001>

<llo_original>
// kernel: tpu_custom_call.1
$region0: #{tpu_custom_call.1}
  #allocation0 [shape = 'u32[]', space=smem, size = 0x4, offset = 0x4, fixed_abs, tag = 'smem constant byte address 0x4 - core index']
  #allocation1 [shape = 'u32[144,128]{1,0:T(1,128)}', space=vmem, size = 0x12000, scoped, tag = 'internal scratch']
  %s0 = inlined_call_operand.hbm [shape: f32[32,128], index: 0, kind: input, shape index: {}]
  %s1 = inlined_call_operand.hbm [shape: bf16[384,128], index: 1, kind: input, shape index: {}]
  %s2 = inlined_call_operand.vmem [shape: f32[1,128], index: 2, kind: input, shape index: {}]
  %s3 = inlined_call_operand.hbm [shape: bf16[384,128], index: 3, kind: input, shape index: {}]
  %s4 = inlined_call_operand.vmem [shape: f32[1,128], index: 4, kind: input, shape index: {}]
  %s5 = inlined_call_operand.hbm [shape: f32[32,128], index: 5, kind: output, shape index: {}]
  %s6 = sld [smem:[#allocation0]]
  $region42: #{tpu_custom_call.1} parent=0
    _
  %s8 = ssub.s32 1, %s6
  %s9 = scalar_select 0, %s8, %s6
  $region1: #{tpu_custom_call.1} parent=0
    #allocation2 [shape = 'u8[16384]{0}', space=vmem, size = 0x4000, scoped, tag = 'input window, operand 0, single buffered']
    #allocation3 [shape = 's32[1]{0}', space=sflag, size = 0x4, scoped, tag = 'scoped memory for tpu_custom_call.1']
    #allocation4 [shape = 's32[1]{0}', space=sflag, size = 0x4, scoped, tag = 'scoped memory for tpu_custom_call.1']
    #allocation5 [shape = 'u8[98304]{0}', space=vmem, size = 0x18000, scoped, tag = 'input window, operand 1, single buffered']
    #allocation6 [shape = 's32[1]{0}', space=sflag, size = 0x4, scoped, tag = 'scoped memory for tpu_custom_call.1']
    #allocation7 [shape = 'u8[98304]{0}', space=vmem, size = 0x18000, scoped, tag = 'input window, operand 3, single buffered']
    #allocation8 [shape = 'u8[16384]{0}', space=vmem, size = 0x4000, scoped, tag = 'output window, operand 0, single buffered']
    %10 = vsyncpa [#allocation3], 0
    %11 = vsyncpa [#allocation6], 0
    %12 = vsyncpa [#allocation4], 0
    // Predicated region
    $region2: #{tpu_custom_call.1} parent=1 // pred_check
      _
    $region3: #{tpu_custom_call.1} parent=1 // pred_check_branch
      %14 = sbr.rel (0) target = $region5
    $region4: #{tpu_custom_call.1} parent=1 // pred_region
      %s16 = ssub.s32 512, 512
      %17 = vsyncadd [#allocation3], %s16
      %s18 = sshll.u32 [#allocation2], 4
      %s19 = int_to_ptr.vmem [resolvable:$true] %s18
      %24 = dma.hbm_to_vmem [thread:$0]  %s0, 512, %s19, [#allocation3], 128, 128, 8
    $region5: #{tpu_custom_call.1} parent=1 // pred_fallthru
      _
    // Predicated region
    $region6: #{tpu_custom_call.1} parent=1 // pred_check
      _
    $region7: #{tpu_custom_call.1} parent=1 // pred_check_branch
      %26 = sbr.rel (0) target = $region9
    $region8: #{tpu_custom_call.1} parent=1 // pred_region
      %s28 = ssub.s32 3072, 3072
      %29 = vsyncadd [#allocation6], %s28
      %s30 = sshll.u32 [#allocation5], 4
      %s31 = int_to_ptr.vmem [resolvable:$true] %s30
      %36 = dma.hbm_to_vmem [thread:$0]  %s1, 3072, %s31, [#allocation6], 64, 64, 4
    $region9: #{tpu_custom_call.1} parent=1 // pred_fallthru
      _
    // Predicated region
    $region10: #{tpu_custom_call.1} parent=1 // pred_check
      _
    $region11: #{tpu_custom_call.1} parent=1 // pred_check_branch
      %38 = sbr.rel (0) target = $region13
    $region12: #{tpu_custom_call.1} parent=1 // pred_region
      _
    $region13: #{tpu_custom_call.1} parent=1 // pred_fallthru
      _
    // Predicated region
    $region14: #{tpu_custom_call.1} parent=1 // pred_check
      _
    $region15: #{tpu_custom_call.1} parent=1 // pred_check_branch
      %40 = sbr.rel (0) target = $region17
    $region16: #{tpu_custom_call.1} parent=1 // pred_region
      %s42 = ssub.s32 3072, 3072
      %43 = vsyncadd [#allocation6], %s42
      %s44 = sshll.u32 [#allocation7], 4
      %s45 = int_to_ptr.vmem [resolvable:$true] %s44
      %50 = dma.hbm_to_vmem [thread:$0]  %s3, 3072, %s45, [#allocation6], 64, 64, 4
    $region17: #{tpu_custom_call.1} parent=1 // pred_fallthru
      _
    // Predicated region
    $region18: #{tpu_custom_call.1} parent=1 // pred_check
      _
    $region19: #{tpu_custom_call.1} parent=1 // pred_check_branch
      %52 = sbr.rel (0) target = $region21
    $region20: #{tpu_custom_call.1} parent=1 // pred_region
      _
    $region21: #{tpu_custom_call.1} parent=1 // pred_fallthru
      _
    // Predicated region
    $region22: #{tpu_custom_call.1} parent=1 // pred_check
      _
    $region23: #{tpu_custom_call.1} parent=1 // pred_check_branch
      %54 = sbr.rel (0) target = $region25
    $region24: #{tpu_custom_call.1} parent=1 // pred_region
      %55 = dma.done [#allocation3], 512
    $region25: #{tpu_custom_call.1} parent=1 // pred_fallthru
      _
    // Predicated region
    $region26: #{tpu_custom_call.1} parent=1 // pred_check
      _
    $region27: #{tpu_custom_call.1} parent=1 // pred_check_branch
      %57 = sbr.rel (0) target = $region29
    $region28: #{tpu_custom_call.1} parent=1 // pred_region
      %58 = dma.done [#allocation6], 3072
    $region29: #{tpu_custom_call.1} parent=1 // pred_fallthru
      _
    // Predicated region
    $region30: #{tpu_custom_call.1} parent=1 // pred_check
      _
    $region31: #{tpu_custom_call.1} parent=1 // pred_check_branch
      %60 = sbr.rel (0) target = $region33
    $region32: #{tpu_custom_call.1} parent=1 // pred_region
      %61 = dma.done [#allocation6], 3072
    $region33: #{tpu_custom_call.1} parent=1 // pred_fallthru
      _
    %v63 = vld [vmem:[#allocation2] sm:$0xff]
    %v64 = vld [vmem:[#allocation2 + $0x8] sm:$0xff]
    %v65 = vld [vmem:[#allocation2 + $0x10] sm:$0xff]
    %v66 = vld [vmem:[#allocation2 + $0x18] sm:$0xff]
    %v67 = vlaneseq
    %v68 = vshrl.u32 %v67, 7
    %v69 = vadd.s32 %v68, 8
    %v70 = vadd.s32 %v68, 16
    %v71 = vadd.s32 %v68, 24
    %vm72 = vcmp.lt.s32.totalorder %v68, 0
    %v73 = vsub.s32 0, %v68
    %v74 = vsel %vm72, %v73, %v68
    %v75 = vshrl.u32 %v74, 4
    %v76 = vand.u32 %v74, 15
    %v77 = vsub.s32 0, %v76
    %v78 = vsel %vm72, %v77, %v76
    %vm79 = vcmp.lt.s32.totalorder %v69, 0
    %v80 = vsub.s32 0, %v69
    %v81 = vsel %vm79, %v80, %v69
    %v82 = vshrl.u32 %v81, 4
    %v83 = vand.u32 %v81, 15
    %v84 = vsub.s32 0, %v83
    %v85 = vsel %vm79, %v84, %v83
    %vm86 = vcmp.lt.s32.totalorder %v70, 0
    %v87 = vsub.s32 0, %v70
    %v88 = vsel %vm86, %v87, %v70
    %v89 = vshrl.u32 %v88, 4
    %v90 = vand.u32 %v88, 15
    %v91 = vsub.s32 0, %v90
    %v92 = vsel %vm86, %v91, %v90
    %vm93 = vcmp.lt.s32.totalorder %v71, 0
    %v94 = vsub.s32 0, %v71
    %v95 = vsel %vm93, %v94, %v71
    %v96 = vshrl.u32 %v95, 4
    %v97 = vand.u32 %v95, 15
    %v98 = vsub.s32 0, %v97
    %v99 = vsel %vm93, %v98, %v97
    %vm100 = vcmp.ne.s32.totalorder %v78, 0
    %vm101 = vcmp.ne.s32.totalorder %v85, 0
    %vm102 = vcmp.ne.s32.totalorder %v92, 0
    %vm103 = vcmp.ne.s32.totalorder %v99, 0
    %vm104 = vcmp.lt.s32.totalorder %v78, 0
    %vm105 = vcmp.lt.s32.totalorder %v85, 0
    %vm106 = vcmp.lt.s32.totalorder %v92, 0
    %vm107 = vcmp.lt.s32.totalorder %v99, 0
    %vm108 = vmand %vm104, %vm100
    %vm109 = vmand %vm105, %vm101
    %vm110 = vmand %vm106, %vm102
    %vm111 = vmand %vm107, %vm103
    %v112 = vadd.s32 %v78, 16
    %v113 = vadd.s32 %v85, 16
    %v114 = vadd.s32 %v92, 16
    %v115 = vadd.s32 %v99, 16
    %v116 = vsel %vm108, %v112, %v78
    %v117 = vsel %vm109, %v113, %v85
    %v118 = vsel %vm110, %v114, %v92
    %v119 = vsel %vm111, %v115, %v99
    %vm120 = vcmp.gt.s32.totalorder %v116, 0
    %vm121 = vcmp.gt.s32.totalorder %v117, 0
    %vm122 = vcmp.gt.s32.totalorder %v118, 0
    %vm123 = vcmp.gt.s32.totalorder %v119, 0
    %vm124 = vcmp.lt.s32.totalorder %v116, 15
    %vm125 = vcmp.lt.s32.totalorder %v117, 15
    %vm126 = vcmp.lt.s32.totalorder %v118, 15
    %vm127 = vcmp.lt.s32.totalorder %v119, 15
    %v128 = vrot.slane %v63, 7
    %v129 = vrot.slane %v64, 7
    %v130 = vrot.slane %v65, 7
    %v131 = vrot.slane %v66, 7
    %vm132 = vcmp.lt.s32.totalorder %v68, 1
    %v133 = vsel %vm132, %v130, %v131
    %v134 = vsel %vm132, %v129, %v130
    %v135 = vsel %vm132, %v128, %v129
    %v136 = vsel %vm132, %v131, %v128
    %v137 = vsel %vm120, %v136, 0.0
    %v138 = vsel %vm121, %v135, 0.0
    %v139 = vsel %vm122, %v134, 0.0
    %v140 = vsel %vm123, %v133, 0.0
    %v141 = vrot.slane %v63, 1
    %v142 = vrot.slane %v64, 1
    %v143 = vrot.slane %v65, 1
    %v144 = vrot.slane %v66, 1
    %vm145 = vcmp.lt.s32.totalorder %v68, 7
    %v146 = vsel %vm145, %v143, %v144
    %v147 = vsel %vm145, %v142, %v143
    %v148 = vsel %vm145, %v141, %v142
    %v149 = vsel %vm145, %v144, %v141
    %v150 = vsel %vm124, %v148, 0.0
    %v151 = vsel %vm125, %v147, 0.0
    %v152 = vsel %vm126, %v146, 0.0
    %v153 = vsel %vm127, %v149, 0.0
    %v154 = vpack.c.bf16 %v138, %v137
    %v155 = vpack.c.bf16 %v140, %v139
    %v156 = vpack.c.bf16 %v64, %v63
    %v157 = vpack.c.bf16 %v66, %v65
    %v158 = vpack.c.bf16 %v151, %v150
    %v159 = vpack.c.bf16 %v153, %v152
    %v160 = vld [vmem:[#allocation5] sm:$0xf]
    %v161 = vld [vmem:[#allocation5 + $0x4] sm:$0xf]
    %v162 = vld [vmem:[#allocation5 + $0x8] sm:$0xf]
    %v163 = vld [vmem:[#allocation5 + $0xc] sm:$0xf]
    %v164 = vld [vmem:[#allocation5 + $0x10] sm:$0xf]
    %v165 = vld [vmem:[#allocation5 + $0x14] sm:$0xf]
    %v166 = vld [vmem:[#allocation5 + $0x18] sm:$0xf]
    %v167 = vld [vmem:[#allocation5 + $0x1c] sm:$0xf]
    %v168 = vld [vmem:[#allocation5 + $0x20] sm:$0xf]
    %v169 = vld [vmem:[#allocation5 + $0x24] sm:$0xf]
    %v170 = vld [vmem:[#allocation5 + $0x28] sm:$0xf]
    %v171 = vld [vmem:[#allocation5 + $0x2c] sm:$0xf]
    %v172 = vld [vmem:[#allocation5 + $0x30] sm:$0xf]
    %v173 = vld [vmem:[#allocation5 + $0x34] sm:$0xf]
    %v174 = vld [vmem:[#allocation5 + $0x38] sm:$0xf]
    %v175 = vld [vmem:[#allocation5 + $0x3c] sm:$0xf]
    %v176 = vld [vmem:[#allocation5 + $0x40] sm:$0xf]
    %v177 = vld [vmem:[#allocation5 + $0x44] sm:$0xf]
    %v178 = vld [vmem:[#allocation5 + $0x48] sm:$0xf]
    %v179 = vld [vmem:[#allocation5 + $0x4c] sm:$0xf]
    %v180 = vld [vmem:[#allocation5 + $0x50] sm:$0xf]
    %v181 = vld [vmem:[#allocation5 + $0x54] sm:$0xf]
    %v182 = vld [vmem:[#allocation5 + $0x58] sm:$0xf]
    %v183 = vld [vmem:[#allocation5 + $0x5c] sm:$0xf]
    %v184 = vld [vmem:[#allocation5 + $0x60] sm:$0xf]
    %v185 = vld [vmem:[#allocation5 + $0x64] sm:$0xf]
    %v186 = vld [vmem:[#allocation5 + $0x68] sm:$0xf]
    %v187 = vld [vmem:[#allocation5 + $0x6c] sm:$0xf]
    %v188 = vld [vmem:[#allocation5 + $0x70] sm:$0xf]
    %v189 = vld [vmem:[#allocation5 + $0x74] sm:$0xf]
    %v190 = vld [vmem:[#allocation5 + $0x78] sm:$0xf]
    %v191 = vld [vmem:[#allocation5 + $0x7c] sm:$0xf]
    %v192 = vld [vmem:[#allocation5 + $0x80] sm:$0xf]
    %v193 = vld [vmem:[#allocation5 + $0x84] sm:$0xf]
    %v194 = vld [vmem:[#allocation5 + $0x88] sm:$0xf]
    %v195 = vld [vmem:[#allocation5 + $0x8c] sm:$0xf]
    %v196 = vld [vmem:[#allocation5 + $0x90] sm:$0xf]
    %v197 = vld [vmem:[#allocation5 + $0x94] sm:$0xf]
    %v198 = vld [vmem:[#allocation5 + $0x98] sm:$0xf]
    %v199 = vld [vmem:[#allocation5 + $0x9c] sm:$0xf]
    %v200 = vld [vmem:[#allocation5 + $0xa0] sm:$0xf]
    %v201 = vld [vmem:[#allocation5 + $0xa4] sm:$0xf]
    %v202 = vld [vmem:[#allocation5 + $0xa8] sm:$0xf]
    %v203 = vld [vmem:[#allocation5 + $0xac] sm:$0xf]
    %v204 = vld [vmem:[#allocation5 + $0xb0] sm:$0xf]
    %v205 = vld [vmem:[#allocation5 + $0xb4] sm:$0xf]
    %v206 = vld [vmem:[#allocation5 + $0xb8] sm:$0xf]
    %v207 = vld [vmem:[#allocation5 + $0xbc] sm:$0xf]
    %v208 = vld [vmem:[%s2] sm:$0x1]
    %v210 = vlaneseq
    %v211 = vshrl.u32 %v210, 7
    %v212 = vsub.s32 0, %v211
    %v213 = vrot.slane %v208, %v212
    %v263 = vunpack.c.l.b16 %v160
    %v264 = vunpack.c.l.b16 %v161
    %v265 = vunpack.c.l.b16 %v162
    %v266 = vunpack.c.l.b16 %v163
    %v267 = vunpack.c.l.b16 %v164
    %v268 = vunpack.c.l.b16 %v165
    %v269 = vunpack.c.l.b16 %v166
    %v270 = vunpack.c.l.b16 %v167
    %v271 = vunpack.c.l.b16 %v168
    %v272 = vunpack.c.l.b16 %v169
    %v273 = vunpack.c.l.b16 %v170
    %v274 = vunpack.c.l.b16 %v171
    %v275 = vunpack.c.l.b16 %v172
    %v276 = vunpack.c.l.b16 %v173
    %v277 = vunpack.c.l.b16 %v174
    %v278 = vunpack.c.l.b16 %v175
    %v279 = vunpack.c.l.b16 %v176
    %v280 = vunpack.c.l.b16 %v177
    %v281 = vunpack.c.l.b16 %v178
    %v282 = vunpack.c.l.b16 %v179
    %v283 = vunpack.c.l.b16 %v180
    %v284 = vunpack.c.l.b16 %v181
    %v285 = vunpack.c.l.b16 %v182
    %v286 = vunpack.c.l.b16 %v183
    %v287 = vunpack.c.l.b16 %v184
    %v288 = vunpack.c.l.b16 %v185
    %v289 = vunpack.c.l.b16 %v186
    %v290 = vunpack.c.l.b16 %v187
    %v291 = vunpack.c.l.b16 %v188
    %v292 = vunpack.c.l.b16 %v189
    %v293 = vunpack.c.l.b16 %v190
    %v294 = vunpack.c.l.b16 %v191
    %v295 = vunpack.c.l.b16 %v192
    %v296 = vunpack.c.l.b16 %v193
    %v297 = vunpack.c.l.b16 %v194
    %v298 = vunpack.c.l.b16 %v195
    %v299 = vunpack.c.l.b16 %v196
    %v300 = vunpack.c.l.b16 %v197
    %v301 = vunpack.c.l.b16 %v198
    %v302 = vunpack.c.l.b16 %v199
    %v303 = vunpack.c.l.b16 %v200
    %v304 = vunpack.c.l.b16 %v201
    %v305 = vunpack.c.l.b16 %v202
    %v306 = vunpack.c.l.b16 %v203
    %v307 = vunpack.c.l.b16 %v204
    %v308 = vunpack.c.l.b16 %v205
    %v309 = vunpack.c.l.b16 %v206
    %v310 = vunpack.c.l.b16 %v207
    %v311 = vpack.c.b16 %v264, %v263
    %v312 = vpack.c.b16 %v266, %v265
    %v313 = vpack.c.b16 %v268, %v267
    %v314 = vpack.c.b16 %v270, %v269
    %v315 = vpack.c.b16 %v272, %v271
    %v316 = vpack.c.b16 %v274, %v273
    %v317 = vpack.c.b16 %v276, %v275
    %v318 = vpack.c.b16 %v278, %v277
    %v319 = vpack.c.b16 %v280, %v279
    %v320 = vpack.c.b16 %v282, %v281
    %v321 = vpack.c.b16 %v284, %v283
    %v322 = vpack.c.b16 %v286, %v285
    %v323 = vpack.c.b16 %v288, %v287
    %v324 = vpack.c.b16 %v290, %v289
    %v325 = vpack.c.b16 %v292, %v291
    %v326 = vpack.c.b16 %v294, %v293
    %v327 = vpack.c.b16 %v296, %v295
    %v328 = vpack.c.b16 %v298, %v297
    %v329 = vpack.c.b16 %v300, %v299
    %v330 = vpack.c.b16 %v302, %v301
    %v331 = vpack.c.b16 %v304, %v303
    %v332 = vpack.c.b16 %v306, %v305
    %v333 = vpack.c.b16 %v308, %v307
    %v334 = vpack.c.b16 %v310, %v309
    %359 = vmatprep.subr.bf16.mxu0 0
    %360 = vmatpush1.bf16.msra.mxu0 %v311
    %361 = vmatprep.subr.bf16.mxu0 0
    %362 = vmatpush1.bf16.msra.mxu0 %v312
    %363 = vmatprep.subr.bf16.mxu0 0
    %364 = vmatpush1.bf16.msra.mxu0 %v313
    %365 = vmatprep.subr.bf16.mxu0 0
    %366 = vmatpush1.bf16.msra.mxu0 %v314
    %367 = vmatprep.subr.bf16.mxu0 0
    %368 = vmatpush1.bf16.msra.mxu0 %v315
    %369 = vmatprep.subr.bf16.mxu0 0
    %370 = vmatpush1.bf16.msra.mxu0 %v316
    %371 = vmatprep.subr.bf16.mxu0 0
    %372 = vmatpush1.bf16.msra.mxu0 %v317
    %373 = vmatprep.subr.bf16.mxu0 0
    %374 = vmatpush1.bf16.msra.mxu0 %v318
    %375 = vmatprep.subr.bf16.mxu0 0
    %376 = vmatpush1.bf16.msra.mxu0 %v319
    %377 = vmatprep.subr.bf16.mxu0 0
    %378 = vmatpush1.bf16.msra.mxu0 %v320
    %379 = vmatprep.subr.bf16.mxu0 0
    %380 = vmatpush1.bf16.msra.mxu0 %v321
    %381 = vmatprep.subr.bf16.mxu0 0
    %382 = vmatpush1.bf16.msra.mxu0 %v322
    %383 = vmatprep.subr.bf16.mxu0 0
    %384 = vmatpush1.bf16.msra.mxu0 %v323
    %385 = vmatprep.subr.bf16.mxu0 0
    %386 = vmatpush1.bf16.msra.mxu0 %v324
    %387 = vmatprep.subr.bf16.mxu0 0
    %388 = vmatpush1.bf16.msra.mxu0 %v325
    %389 = vmatprep.subr.bf16.mxu0 0
    %390 = vmatpush1.bf16.msra.mxu0 %v326
    %391 = vmatprep.mubr.bf16.mxu0 %v156
    %392 = vmatmul.mubr.bf16.gmra.mrb[0].mxu0 %v154
    %v393 = vpop.f32.mrb[0].mxu0
    %v394 = vadd.f32 %v213, %v393
    %v395 = vpop.f32.mrb[0].mxu0
    %v396 = vpop.f32.mrb[0].mxu0
    %v397 = vadd.f32 %v213, %v396
    %v398 = vpop.f32.mrb[0].mxu0
    %399 = vmatprep.mubr.bf16.mxu0 %v157
    %400 = vmatmul.mubr.bf16.gmra.mrb[0].mxu0 %v155
    %v401 = vpop.f32.mrb[0].mxu0
    %v402 = vadd.f32 %v213, %v401
    %v403 = vpop.f32.mrb[0].mxu0
    %v404 = vpop.f32.mrb[0].mxu0
    %v405 = vadd.f32 %v213, %v404
    %v406 = vpop.f32.mrb[0].mxu0
    %407 = vdwg.mxu0
    %408 = vmatprep.subr.bf16.mxu0 0
    %409 = vmatpush1.bf16.msra.mxu0 %v327
    %410 = vmatprep.subr.bf16.mxu0 0
    %411 = vmatpush1.bf16.msra.mxu0 %v328
    %412 = vmatprep.subr.bf16.mxu0 0
    %413 = vmatpush1.bf16.msra.mxu0 %v329
    %414 = vmatprep.subr.bf16.mxu0 0
    %415 = vmatpush1.bf16.msra.mxu0 %v330
    %416 = vmatprep.subr.bf16.mxu0 0
    %417 = vmatpush1.bf16.msra.mxu0 %v331
    %418 = vmatprep.subr.bf16.mxu0 0
    %419 = vmatpush1.bf16.msra.mxu0 %v332
    %420 = vmatprep.subr.bf16.mxu0 0
    %421 = vmatpush1.bf16.msra.mxu0 %v333
    %422 = vmatprep.subr.bf16.mxu0 0
    %423 = vmatpush1.bf16.msra.mxu0 %v334
    %424 = vmatprep.subr.bf16.mxu0 0
    %425 = vmatpush1.bf16.msra.mxu0 0
    %426 = vmatprep.subr.bf16.mxu0 0
    %427 = vmatpush1.bf16.msra.mxu0 0
    %428 = vmatprep.subr.bf16.mxu0 0
    %429 = vmatpush1.bf16.msra.mxu0 0
    %430 = vmatprep.subr.bf16.mxu0 0
    %431 = vmatpush1.bf16.msra.mxu0 0
    %432 = vmatprep.subr.bf16.mxu0 0
    %433 = vmatpush1.bf16.msra.mxu0 0
    %434 = vmatprep.subr.bf16.mxu0 0
    %435 = vmatpush1.bf16.msra.mxu0 0
    %436 = vmatprep.subr.bf16.mxu0 0
    %437 = vmatpush1.bf16.msra.mxu0 0
    %438 = vmatprep.subr.bf16.mxu0 0
    %439 = vmatpush1.bf16.msra.mxu0 0
    %440 = vmatprep.mubr.bf16.mxu0 0
    %441 = vmatmul.mubr.bf16.gmra.mrb[0].mxu0 %v158
    %v442 = vpop.f32.mrb[0].mxu0
    %v443 = vadd.f32 %v394, %v442
    %v444 = vpop.f32.mrb[0].mxu0
    %v445 = vpop.f32.mrb[0].mxu0
    %v446 = vadd.f32 %v397, %v445
    %v447 = vpop.f32.mrb[0].mxu0
    %448 = vmatprep.mubr.bf16.mxu0 0
    %449 = vmatmul.mubr.bf16.gmra.mrb[0].mxu0 %v159
    %v450 = vpop.f32.mrb[0].mxu0
    %v451 = vadd.f32 %v402, %v450
    %v452 = vpop.f32.mrb[0].mxu0
    %v453 = vpop.f32.mrb[0].mxu0
    %v454 = vadd.f32 %v405, %v453
    %v455 = vpop.f32.mrb[0].mxu0
    %456 = vdwg.mxu0
    %v457 = vmax.f32 %v443, 0.0
    %v458 = vmax.f32 %v446, 0.0
    %v459 = vmax.f32 %v451, 0.0
    %v460 = vmax.f32 %v454, 0.0
    %v461 = vrot.slane %v457, 7
    %v462 = vrot.slane %v458, 7
    %v463 = vrot.slane %v459, 7
    %v464 = vrot.slane %v460, 7
    %v465 = vsel %vm132, %v463, %v464
    %v466 = vsel %vm132, %v462, %v463
    %v467 = vsel %vm132, %v461, %v462
    %v468 = vsel %vm132, %v464, %v461
    %v469 = vsel %vm120, %v468, 0.0
    %v470 = vsel %vm121, %v467, 0.0
    %v471 = vsel %vm122, %v466, 0.0
    %v472 = vsel %vm123, %v465, 0.0
    %v473 = vrot.slane %v457, 1
    %v474 = vrot.slane %v458, 1
    %v475 = vrot.slane %v459, 1
    %v476 = vrot.slane %v460, 1
    %v477 = vsel %vm145, %v475, %v476
    %v478 = vsel %vm145, %v474, %v475
    %v479 = vsel %vm145, %v473, %v474
    %v480 = vsel %vm145, %v476, %v473
    %v481 = vsel %vm124, %v479, 0.0
    %v482 = vsel %vm125, %v478, 0.0
    %v483 = vsel %vm126, %v477, 0.0
    %v484 = vsel %vm127, %v480, 0.0
    %v485 = vpack.c.bf16 %v470, %v469
    %v486 = vpack.c.bf16 %v472, %v471
    %v487 = vpack.c.bf16 %v458, %v457
    %v488 = vpack.c.bf16 %v460, %v459
    %v489 = vpack.c.bf16 %v482, %v481
    %v490 = vpack.c.bf16 %v484, %v483
    %v491 = vld [vmem:[#allocation7] sm:$0xf]
    %v492 = vld [vmem:[#allocation7 + $0x4] sm:$0xf]
    %v493 = vld [vmem:[#allocation7 + $0x8] sm:$0xf]
    %v494 = vld [vmem:[#allocation7 + $0xc] sm:$0xf]
    %v495 = vld [vmem:[#allocation7 + $0x10] sm:$0xf]
    %v496 = vld [vmem:[#allocation7 + $0x14] sm:$0xf]
    %v497 = vld [vmem:[#allocation7 + $0x18] sm:$0xf]
    %v498 = vld [vmem:[#allocation7 + $0x1c] sm:$0xf]
    %v499 = vld [vmem:[#allocation7 + $0x20] sm:$0xf]
    %v500 = vld [vmem:[#allocation7 + $0x24] sm:$0xf]
    %v501 = vld [vmem:[#allocation7 + $0x28] sm:$0xf]
    %v502 = vld [vmem:[#allocation7 + $0x2c] sm:$0xf]
    %v503 = vld [vmem:[#allocation7 + $0x30] sm:$0xf]
    %v504 = vld [vmem:[#allocation7 + $0x34] sm:$0xf]
    %v505 = vld [vmem:[#allocation7 + $0x38] sm:$0xf]
    %v506 = vld [vmem:[#allocation7 + $0x3c] sm:$0xf]
    %v507 = vld [vmem:[#allocation7 + $0x40] sm:$0xf]
    %v508 = vld [vmem:[#allocation7 + $0x44] sm:$0xf]
    %v509 = vld [vmem:[#allocation7 + $0x48] sm:$0xf]
    %v510 = vld [vmem:[#allocation7 + $0x4c] sm:$0xf]
    %v511 = vld [vmem:[#allocation7 + $0x50] sm:$0xf]
    %v512 = vld [vmem:[#allocation7 + $0x54] sm:$0xf]
    %v513 = vld [vmem:[#allocation7 + $0x58] sm:$0xf]
    %v514 = vld [vmem:[#allocation7 + $0x5c] sm:$0xf]
    %v515 = vld [vmem:[#allocation7 + $0x60] sm:$0xf]
    %v516 = vld [vmem:[#allocation7 + $0x64] sm:$0xf]
    %v517 = vld [vmem:[#allocation7 + $0x68] sm:$0xf]
    %v518 = vld [vmem:[#allocation7 + $0x6c] sm:$0xf]
    %v519 = vld [vmem:[#allocation7 + $0x70] sm:$0xf]
    %v520 = vld [vmem:[#allocation7 + $0x74] sm:$0xf]
    %v521 = vld [vmem:[#allocation7 + $0x78] sm:$0xf]
    %v522 = vld [vmem:[#allocation7 + $0x7c] sm:$0xf]
    %v523 = vld [vmem:[#allocation7 + $0x80] sm:$0xf]
    %v524 = vld [vmem:[#allocation7 + $0x84] sm:$0xf]
    %v525 = vld [vmem:[#allocation7 + $0x88] sm:$0xf]
    %v526 = vld [vmem:[#allocation7 + $0x8c] sm:$0xf]
    %v527 = vld [vmem:[#allocation7 + $0x90] sm:$0xf]
    %v528 = vld [vmem:[#allocation7 + $0x94] sm:$0xf]
    %v529 = vld [vmem:[#allocation7 + $0x98] sm:$0xf]
    %v530 = vld [vmem:[#allocation7 + $0x9c] sm:$0xf]
    %v531 = vld [vmem:[#allocation7 + $0xa0] sm:$0xf]
    %v532 = vld [vmem:[#allocation7 + $0xa4] sm:$0xf]
    %v533 = vld [vmem:[#allocation7 + $0xa8] sm:$0xf]
    %v534 = vld [vmem:[#allocation7 + $0xac] sm:$0xf]
    %v535 = vld [vmem:[#allocation7 + $0xb0] sm:$0xf]
    %v536 = vld [vmem:[#allocation7 + $0xb4] sm:$0xf]
    %v537 = vld [vmem:[#allocation7 + $0xb8] sm:$0xf]
    %v538 = vld [vmem:[#allocation7 + $0xbc] sm:$0xf]
    %v539 = vld [vmem:[%s4] sm:$0x1]
    %v541 = vlaneseq
    %v542 = vshrl.u32 %v541, 7
    %v543 = vsub.s32 0, %v542
    %v544 = vrot.slane %v539, %v543
    %v594 = vunpack.c.l.b16 %v491
    %v595 = vunpack.c.l.b16 %v492
    %v596 = vunpack.c.l.b16 %v493
    %v597 = vunpack.c.l.b16 %v494
    %v598 = vunpack.c.l.b16 %v495
    %v599 = vunpack.c.l.b16 %v496
    %v600 = vunpack.c.l.b16 %v497
    %v601 = vunpack.c.l.b16 %v498
    %v602 = vunpack.c.l.b16 %v499
    %v603 = vunpack.c.l.b16 %v500
    %v604 = vunpack.c.l.b16 %v501
    %v605 = vunpack.c.l.b16 %v502
    %v606 = vunpack.c.l.b16 %v503
    %v607 = vunpack.c.l.b16 %v504
    %v608 = vunpack.c.l.b16 %v505
    %v609 = vunpack.c.l.b16 %v506
    %v610 = vunpack.c.l.b16 %v507
    %v611 = vunpack.c.l.b16 %v508
    %v612 = vunpack.c.l.b16 %v509
    %v613 = vunpack.c.l.b16 %v510
    %v614 = vunpack.c.l.b16 %v511
    %v615 = vunpack.c.l.b16 %v512
    %v616 = vunpack.c.l.b16 %v513
    %v617 = vunpack.c.l.b16 %v514
    %v618 = vunpack.c.l.b16 %v515
    %v619 = vunpack.c.l.b16 %v516
    %v620 = vunpack.c.l.b16 %v517
    %v621 = vunpack.c.l.b16 %v518
    %v622 = vunpack.c.l.b16 %v519
    %v623 = vunpack.c.l.b16 %v520
    %v624 = vunpack.c.l.b16 %v521
    %v625 = vunpack.c.l.b16 %v522
    %v626 = vunpack.c.l.b16 %v523
    %v627 = vunpack.c.l.b16 %v524
    %v628 = vunpack.c.l.b16 %v525
    %v629 = vunpack.c.l.b16 %v526
    %v630 = vunpack.c.l.b16 %v527
    %v631 = vunpack.c.l.b16 %v528
    %v632 = vunpack.c.l.b16 %v529
    %v633 = vunpack.c.l.b16 %v530
    %v634 = vunpack.c.l.b16 %v531
    %v635 = vunpack.c.l.b16 %v532
    %v636 = vunpack.c.l.b16 %v533
    %v637 = vunpack.c.l.b16 %v534
    %v638 = vunpack.c.l.b16 %v535
    %v639 = vunpack.c.l.b16 %v536
    %v640 = vunpack.c.l.b16 %v537
    %v641 = vunpack.c.l.b16 %v538
    %v642 = vpack.c.b16 %v595, %v594
    %v643 = vpack.c.b16 %v597, %v596
    %v644 = vpack.c.b16 %v599, %v598
    %v645 = vpack.c.b16 %v601, %v600
    %v646 = vpack.c.b16 %v603, %v602
    %v647 = vpack.c.b16 %v605, %v604
    %v648 = vpack.c.b16 %v607, %v606
    %v649 = vpack.c.b16 %v609, %v608
    %v650 = vpack.c.b16 %v611, %v610
    %v651 = vpack.c.b16 %v613, %v612
    %v652 = vpack.c.b16 %v615, %v614
    %v653 = vpack.c.b16 %v617, %v616
    %v654 = vpack.c.b16 %v619, %v618
    %v655 = vpack.c.b16 %v621, %v620
    %v656 = vpack.c.b16 %v623, %v622
    %v657 = vpack.c.b16 %v625, %v624
    %v658 = vpack.c.b16 %v627, %v626
    %v659 = vpack.c.b16 %v629, %v628
    %v660 = vpack.c.b16 %v631, %v630
    %v661 = vpack.c.b16 %v633, %v632
    %v662 = vpack.c.b16 %v635, %v634
    %v663 = vpack.c.b16 %v637, %v636
    %v664 = vpack.c.b16 %v639, %v638
    %v665 = vpack.c.b16 %v641, %v640
    %690 = vmatprep.subr.bf16.mxu0 0
    %691 = vmatpush1.bf16.msra.mxu0 %v642
    %692 = vmatprep.subr.bf16.mxu0 0
    %693 = vmatpush1.bf16.msra.mxu0 %v643
    %694 = vmatprep.subr.bf16.mxu0 0
    %695 = vmatpush1.bf16.msra.mxu0 %v644
    %696 = vmatprep.subr.bf16.mxu0 0
    %697 = vmatpush1.bf16.msra.mxu0 %v645
    %698 = vmatprep.subr.bf16.mxu0 0
    %699 = vmatpush1.bf16.msra.mxu0 %v646
    %700 = vmatprep.subr.bf16.mxu0 0
    %701 = vmatpush1.bf16.msra.mxu0 %v647
    %702 = vmatprep.subr.bf16.mxu0 0
    %703 = vmatpush1.bf16.msra.mxu0 %v648
    %704 = vmatprep.subr.bf16.mxu0 0
    %705 = vmatpush1.bf16.msra.mxu0 %v649
    %706 = vmatprep.subr.bf16.mxu0 0
    %707 = vmatpush1.bf16.msra.mxu0 %v650
    %708 = vmatprep.subr.bf16.mxu0 0
    %709 = vmatpush1.bf16.msra.mxu0 %v651
    %710 = vmatprep.subr.bf16.mxu0 0
    %711 = vmatpush1.bf16.msra.mxu0 %v652
    %712 = vmatprep.subr.bf16.mxu0 0
    %713 = vmatpush1.bf16.msra.mxu0 %v653
    %714 = vmatprep.subr.bf16.mxu0 0
    %715 = vmatpush1.bf16.msra.mxu0 %v654
    %716 = vmatprep.subr.bf16.mxu0 0
    %717 = vmatpush1.bf16.msra.mxu0 %v655
    %718 = vmatprep.subr.bf16.mxu0 0
    %719 = vmatpush1.bf16.msra.mxu0 %v656
    %720 = vmatprep.subr.bf16.mxu0 0
    %721 = vmatpush1.bf16.msra.mxu0 %v657
    %722 = vmatprep.mubr.bf16.mxu0 %v487
    %723 = vmatmul.mubr.bf16.gmra.mrb[0].mxu0 %v485
    %v724 = vpop.f32.mrb[0].mxu0
    %v725 = vadd.f32 %v544, %v724
    %v726 = vpop.f32.mrb[0].mxu0
    %v727 = vpop.f32.mrb[0].mxu0
    %v728 = vadd.f32 %v544, %v727
    %v729 = vpop.f32.mrb[0].mxu0
    %730 = vmatprep.mubr.bf16.mxu0 %v488
    %731 = vmatmul.mubr.bf16.gmra.mrb[0].mxu0 %v486
    %v732 = vpop.f32.mrb[0].mxu0
    %v733 = vadd.f32 %v544, %v732
    %v734 = vpop.f32.mrb[0].mxu0
    %v735 = vpop.f32.mrb[0].mxu0
    %v736 = vadd.f32 %v544, %v735
    %v737 = vpop.f32.mrb[0].mxu0
    %738 = vdwg.mxu0
    %739 = vmatprep.subr.bf16.mxu0 0
    %740 = vmatpush1.bf16.msra.mxu0 %v658
    %741 = vmatprep.subr.bf16.mxu0 0
    %742 = vmatpush1.bf16.msra.mxu0 %v659
    %743 = vmatprep.subr.bf16.mxu0 0
    %744 = vmatpush1.bf16.msra.mxu0 %v660
    %745 = vmatprep.subr.bf16.mxu0 0
    %746 = vmatpush1.bf16.msra.mxu0 %v661
    %747 = vmatprep.subr.bf16.mxu0 0
    %748 = vmatpush1.bf16.msra.mxu0 %v662
    %749 = vmatprep.subr.bf16.mxu0 0
    %750 = vmatpush1.bf16.msra.mxu0 %v663
    %751 = vmatprep.subr.bf16.mxu0 0
    %752 = vmatpush1.bf16.msra.mxu0 %v664
    %753 = vmatprep.subr.bf16.mxu0 0
    %754 = vmatpush1.bf16.msra.mxu0 %v665
    %755 = vmatprep.subr.bf16.mxu0 0
    %756 = vmatpush1.bf16.msra.mxu0 0
    %757 = vmatprep.subr.bf16.mxu0 0
    %758 = vmatpush1.bf16.msra.mxu0 0
    %759 = vmatprep.subr.bf16.mxu0 0
    %760 = vmatpush1.bf16.msra.mxu0 0
    %761 = vmatprep.subr.bf16.mxu0 0
    %762 = vmatpush1.bf16.msra.mxu0 0
    %763 = vmatprep.subr.bf16.mxu0 0
    %764 = vmatpush1.bf16.msra.mxu0 0
    %765 = vmatprep.subr.bf16.mxu0 0
    %766 = vmatpush1.bf16.msra.mxu0 0
    %767 = vmatprep.subr.bf16.mxu0 0
    %768 = vmatpush1.bf16.msra.mxu0 0
    %769 = vmatprep.subr.bf16.mxu0 0
    %770 = vmatpush1.bf16.msra.mxu0 0
    %771 = vmatprep.mubr.bf16.mxu0 0
    %772 = vmatmul.mubr.bf16.gmra.mrb[0].mxu0 %v489
    %v773 = vpop.f32.mrb[0].mxu0
    %v774 = vadd.f32 %v725, %v773
    %v775 = vpop.f32.mrb[0].mxu0
    %v776 = vpop.f32.mrb[0].mxu0
    %v777 = vadd.f32 %v728, %v776
    %v778 = vpop.f32.mrb[0].mxu0
    %779 = vmatprep.mubr.bf16.mxu0 0
    %780 = vmatmul.mubr.bf16.gmra.mrb[0].mxu0 %v490
    %v781 = vpop.f32.mrb[0].mxu0
    %v782 = vadd.f32 %v733, %v781
    %v783 = vpop.f32.mrb[0].mxu0
    %v784 = vpop.f32.mrb[0].mxu0
    %v785 = vadd.f32 %v736, %v784
    %v786 = vpop.f32.mrb[0].mxu0
    %787 = vdwg.mxu0
    %v788 = vadd.f32 %v63, %v774
    %v789 = vadd.f32 %v64, %v777
    %v790 = vadd.f32 %v65, %v782
    %v791 = vadd.f32 %v66, %v785
    %792 = vst [vmem:[#allocation8] sm:$0xff] %v788
    %793 = vst [vmem:[#allocation8 + $0x8] sm:$0xff] %v789
    %794 = vst [vmem:[#allocation8 + $0x10] sm:$0xff] %v790
    %795 = vst [vmem:[#allocation8 + $0x18] sm:$0xff] %v791
    // Predicated region
    $region34: #{tpu_custom_call.1} parent=1 // pred_check
      _
    $region35: #{tpu_custom_call.1} parent=1 // pred_check_branch
      %797 = sbr.rel (0) target = $region37
    $region36: #{tpu_custom_call.1} parent=1 // pred_region
      %s799 = ssub.s32 512, 512
      %800 = vsyncadd [#allocation4], %s799
      %s801 = sshll.u32 [#allocation8], 4
      %s802 = int_to_ptr.vmem [resolvable:$true] %s801
      %807 = dma.vmem_to_hbm [thread:$0]  %s802, 512, %s5, [#allocation4], 128, 128, 8
    $region37: #{tpu_custom_call.1} parent=1 // pred_fallthru
      _
    // Predicated region
    $region38: #{tpu_custom_call.1} parent=1 // pred_check
      _
    $region39: #{tpu_custom_call.1} parent=1 // pred_check_branch
      %809 = sbr.rel (0) target = $region41
    $region40: #{tpu_custom_call.1} parent=1 // pred_region
      %810 = dma.done [#allocation4], 512
    $region41: #{tpu_custom_call.1} parent=1 // pred_fallthru
      _
    %811 = vsyncpa [#allocation3], 1
    %812 = vsyncpa [#allocation6], 1
    %813 = vsyncpa [#allocation4], 1

</llo_original>
